<compile_context>
chip_gen: v7x
topology: tpu7x:2x2x1
jax: 0.10.0
libtpu: 0.0.40
codegen_flags: <defaults>
</compile_context>

<pallas_src>
import math
import jax
import jax.numpy as jnp
from jax import lax
from jax.experimental import pallas as pl
from jax.experimental.pallas import tpu as pltpu

B, S, D, H, FF = 2, 8, 32, 4, 64
DH = D // H
BS = B * S              # 16 flattened query/key rows
NC = H * BS             # 64 score columns: col = h*BS + (b'*S + s')
PW = 128                # lane-dense packed-parameter row width
EPS = 1e-6
NEG = -1e18

LOG_BS = BS.bit_length() - 1
LOG_DH = DH.bit_length() - 1
assert (1 << LOG_BS) == BS and (1 << LOG_DH) == DH  # shifts used in-kernel


def _layer_norm(x, g, b):
    mu = jnp.mean(x, axis=-1, keepdims=True)
    var = jnp.mean((x - mu) ** 2, axis=-1, keepdims=True)
    return (x - mu) * lax.rsqrt(var + EPS) * g + b


def encoder_layer_kernel(x_ref, wbig_ref, w2_ref, sm_ref, out_ref):
    x = x_ref[...]                       # [BS, D]
    wbig = wbig_ref[...]                 # [D, 3D + D + FF]
    wqkv = wbig[:, :3 * D]               # [D, 3D]   (Q columns pre-scaled)
    wo = wbig[:, 3 * D:4 * D]            # [D, D]
    w1 = wbig[:, 4 * D:4 * D + FF]       # [D, FF]

    sm = sm_ref[...]                     # [8 + BS, PW] packed small params + mask
    ln1_g, ln1_b = sm[0, :D], sm[1, :D]
    b_qkv = sm[2, :3 * D]
    b_o = sm[3, :D]
    ln2_g, ln2_b = sm[4, :D], sm[5, :D]
    b_1 = sm[6, :FF]
    b_2 = sm[7, :D]
    addm = sm[8:8 + BS, :NC]             # [BS, NC] additive attention mask (0 / -1e18)

    # ---- pre-attention LayerNorm + fused QKV projection (one MXU push) ----
    xn = _layer_norm(x, ln1_g, ln1_b)
    qkv = jnp.dot(xn, wqkv, preferred_element_type=jnp.float32) + b_qkv   # [BS, 3D]
    q = qkv[:, :D]
    k = qkv[:, D:2 * D]
    v = qkv[:, 2 * D:3 * D]

    # ---- block-structured batched attention (all batches & heads at once) ----
    # bdm[c, j] = 1 iff head(c) == head(j): K/V rows for head h keep only head-h cols,
    # so one full-D contraction per (query, head, key) yields exactly the head-h dot.
    row_head = lax.broadcasted_iota(jnp.int32, (NC, D), 0) >> LOG_BS
    col_head = lax.broadcasted_iota(jnp.int32, (NC, D), 1) >> LOG_DH
    bdm = (row_head == col_head).astype(jnp.float32)                 # [NC, D]
    k_exp = jnp.concatenate([k] * H, axis=0) * bdm                    # [NC, D]
    v_exp = jnp.concatenate([v] * H, axis=0) * bdm                    # [NC, D]

    s = lax.dot_general(q, k_exp, (((1,), (1,)), ((), ())),
                        preferred_element_type=jnp.float32)           # [BS, NC]
    s = s + addm                                                       # mask once
    m = jnp.max(s, axis=-1, keepdims=True)                             # row max (shift-invariant per head)
    e = jnp.exp(s - m)                                                 # [BS, NC]
    ctx_un = jnp.dot(e, v_exp, preferred_element_type=jnp.float32)     # [BS, D] unnormalized
    l_exp = jnp.dot(e, bdm, preferred_element_type=jnp.float32)        # per-head sums, broadcast over DH cols
    # exact reciprocal kept (approx=True is ~2^-12 rel. err: borderline for the 1e-4 check)
    ctx = ctx_un * pl.reciprocal(l_exp, approx=False)

    attn_out = jnp.dot(ctx, wo, preferred_element_type=jnp.float32) + b_o
    out1 = attn_out + x                     # dropout(context) + inputs ; dropout = identity

    # ---- PositionwiseFeedForward: LN -> W1 -> ReLU -> W2 -> + residual ----
    yn = _layer_norm(out1, ln2_g, ln2_b)
    hidden = jnp.maximum(
        jnp.dot(yn, w1, preferred_element_type=jnp.float32) + b_1, 0.0)
    ff = jnp.dot(hidden, w2_ref[...], preferred_element_type=jnp.float32) + b_2

    out_ref[...] = ff + out1                # single [BS, D] store


def init_params(key):
    ks = jax.random.split(key, 8)
    scale = 0.05
    return {
        "ln1_g": jnp.ones((D,), jnp.float32),
        "ln1_b": jnp.zeros((D,), jnp.float32),
        "wq": scale * jax.random.normal(ks[0], (D, D), jnp.float32),
        "bq": scale * jax.random.normal(ks[1], (D,), jnp.float32),
        "wk": scale * jax.random.normal(ks[2], (D, D), jnp.float32),
        "bk": jnp.zeros((D,), jnp.float32),
        "wv": scale * jax.random.normal(ks[3], (D, D), jnp.float32),
        "bv": jnp.zeros((D,), jnp.float32),
        "wo": scale * jax.random.normal(ks[4], (D, D), jnp.float32),
        "bo": scale * jax.random.normal(ks[5], (D,), jnp.float32),
        "ln2_g": jnp.ones((D,), jnp.float32),
        "ln2_b": jnp.zeros((D,), jnp.float32),
        "w1": scale * jax.random.normal(ks[6], (FF, D), jnp.float32),
        "b1": jnp.zeros((FF,), jnp.float32),
        "w2": scale * jax.random.normal(ks[7], (D, FF), jnp.float32),
        "b2": jnp.zeros((D,), jnp.float32),
    }


def transformer_encoder_layer(inputs, mask, p):
    """inputs: [B, S, D] f32, mask: [B, S, S] int32 (1 = masked key)."""
    x2 = inputs.astype(jnp.float32).reshape(BS, D)

    # Fold 1/sqrt(DH) into the Q weight/bias; fuse QKV, and merge wqkv|wo|w1 along lanes.
    qk_scale = 1.0 / math.sqrt(DH)
    wqkv = jnp.concatenate([p["wq"].T * qk_scale, p["wk"].T, p["wv"].T], axis=1)  # [D, 3D]
    wbig = jnp.concatenate([wqkv, p["wo"].T, p["w1"].T], axis=1)                  # [D, 3D+D+FF]
    w2 = p["w2"].T                                                                # [FF, D]
    b_qkv = jnp.concatenate([p["bq"] * qk_scale, p["bk"], p["bv"]])               # [3D]

    # Precompute the additive attention mask [BS, NC]:
    #   col = h*BS + (b'*S + s');  0 where same batch and key not padded, else -1e18.
    bidx = jnp.arange(BS) // S
    same_batch = bidx[:, None] == bidx[None, :]                       # [BS, BS]
    pad_keys = jnp.tile(mask.reshape(BS, S).astype(jnp.int32), (1, B))  # [BS, BS]
    allowed = same_batch & (pad_keys == 0)
    addbase = jnp.where(allowed, 0.0, NEG).astype(jnp.float32)        # [BS, BS]
    addm = jnp.tile(addbase, (1, H))                                  # [BS, NC]

    # Pack every small vector parameter + the additive mask into ONE lane-dense blob.
    def row(vec):
        return jnp.pad(vec, (0, PW - vec.shape[0]))
    pvec = jnp.stack([
        row(p["ln1_g"]), row(p["ln1_b"]),
        row(b_qkv), row(p["bo"]),
        row(p["ln2_g"]), row(p["ln2_b"]),
        row(p["b1"]), row(p["b2"]),
    ])                                                                # [8, PW]
    addm_pad = jnp.pad(addm, ((0, 0), (0, PW - NC)))                  # [BS, PW]
    smalls = jnp.concatenate([pvec, addm_pad], axis=0)                # [8+BS, PW]

    operands = [x2, wbig, w2, smalls]

    def full_spec(shape):
        n = len(shape)
        return pl.BlockSpec(shape, lambda i, _n=n: (0,) * _n)

    in_specs = [full_spec(op.shape) for op in operands]

    flops = (2 * BS * D * (3 * D)         # fused QKV
             + 2 * BS * NC * D            # scores
             + 2 * BS * NC * D * 2        # PV + per-head normalizer
             + 2 * BS * D * D             # output projection
             + 2 * 2 * BS * D * FF)       # FFN
    bytes_accessed = int(sum(op.size * op.dtype.itemsize for op in operands)
                         + BS * D * 4)
    cost = pl.CostEstimate(flops=flops,
                           transcendentals=BS * NC,
                           bytes_accessed=bytes_accessed)

    # grid=(1,): whole problem in one invocation.  For production sizes, add a
    # leading "parallel" axis over row tiles so both v7x TensorCores are used.
    out2 = pl.pallas_call(
        encoder_layer_kernel,
        out_shape=jax.ShapeDtypeStruct((BS, D), jnp.float32),
        grid=(1,),
        in_specs=in_specs,
        out_specs=pl.BlockSpec((BS, D), lambda i: (0, 0)),
        compiler_params=pltpu.CompilerParams(dimension_semantics=("arbitrary",)),
        cost_estimate=cost,
    )(*operands)
    return out2.reshape(B, S, D)


def reference(inputs, mask, p):
    """Pure-JAX reference mirroring the PyTorch module (eval mode)."""
    def ln(x, g, b):
        mu = x.mean(-1, keepdims=True)
        var = ((x - mu) ** 2).mean(-1, keepdims=True)
        return (x - mu) / jnp.sqrt(var + EPS) * g + b

    xn = ln(inputs, p["ln1_g"], p["ln1_b"])
    q = xn @ p["wq"].T + p["bq"]
    k = xn @ p["wk"].T + p["bk"]
    v = xn @ p["wv"].T + p["bv"]
    qh = q.reshape(B, S, H, DH).transpose(0, 2, 1, 3) / math.sqrt(DH)
    kh = k.reshape(B, S, H, DH).transpose(0, 2, 1, 3)
    vh = v.reshape(B, S, H, DH).transpose(0, 2, 1, 3)
    scores = jnp.einsum("bhqd,bhkd->bhqk", qh, kh)
    scores = jnp.where(mask[:, None, :, :] > 0, NEG, scores)
    attn = jax.nn.softmax(scores, axis=-1)
    ctx = jnp.einsum("bhqk,bhkd->bhqd", attn, vh)
    ctx = ctx.transpose(0, 2, 1, 3).reshape(B, S, D)
    attn_out = ctx @ p["wo"].T + p["bo"]
    out = attn_out + inputs
    yn = ln(out, p["ln2_g"], p["ln2_b"])
    hidden = jax.nn.relu(yn @ p["w1"].T + p["b1"])
    ff = hidden @ p["w2"].T + p["b2"]
    return ff + out


if __name__ == "__main__":
    key = jax.random.PRNGKey(0)
    k_in, k_par = jax.random.split(key)

    inputs = jax.random.normal(k_in, (B, S, D), jnp.float32)
    # padding-style mask: batch 0 has full length, batch 1 masks last 3 keys
    lengths = jnp.array([S, S - 3])
    key_pos = jnp.arange(S)[None, None, :]                          # [1, 1, S]
    mask = (key_pos >= lengths[:, None, None]).astype(jnp.int32)    # [B, 1, S]
    mask = jnp.broadcast_to(mask, (B, S, S))

    params = init_params(k_par)

    run = jax.jit(transformer_encoder_layer)
    out = run(inputs, mask, params)
    out = jax.block_until_ready(out)

    ref = reference(inputs, mask, params)
    assert out.shape == (B, S, D)
    assert jnp.allclose(out, ref, rtol=1e-4, atol=1e-4), "mismatch vs reference"

    print("KERNEL_OK")
</pallas_src>

<mosaic_0001>
module attributes {stable_mosaic.version = 11 : i64} {
  func.func @encoder_layer_kernel(%arg0: i32, %arg1: memref<16x32xf32, #tpu.memory_space<vmem>>, %arg2: memref<32x192xf32, #tpu.memory_space<vmem>>, %arg3: memref<64x32xf32, #tpu.memory_space<vmem>>, %arg4: memref<24x128xf32, #tpu.memory_space<vmem>>, %arg5: memref<16x32xf32, #tpu.memory_space<vmem>>) attributes {dimension_semantics = [#tpu.dimension_semantics<arbitrary>], iteration_bounds = array<i64: 1>, scalar_prefetch = 0 : i64, scratch_operands = 0 : i64, tpu.core_type = #tpu.core_type<tc>, window_params = [{pipeline_mode = #tpu.pipeline_mode<synchronous>, transform_indices = @transform_0, window_bounds = array<i64: 16, 32>}, {pipeline_mode = #tpu.pipeline_mode<synchronous>, transform_indices = @transform_1, window_bounds = array<i64: 32, 192>}, {pipeline_mode = #tpu.pipeline_mode<synchronous>, transform_indices = @transform_2, window_bounds = array<i64: 64, 32>}, {pipeline_mode = #tpu.pipeline_mode<synchronous>, transform_indices = @transform_3, window_bounds = array<i64: 24, 128>}, {pipeline_mode = #tpu.pipeline_mode<synchronous>, transform_indices = @transform_4, window_bounds = array<i64: 16, 32>}]} {
    %c0 = arith.constant 0 : index
    %c0_0 = arith.constant 0 : index
    %0 = vector.load %arg1[%c0, %c0_0] : memref<16x32xf32, #tpu.memory_space<vmem>>, vector<16x32xf32>
    %c0_1 = arith.constant 0 : index
    %c0_2 = arith.constant 0 : index
    %1 = vector.load %arg2[%c0_1, %c0_2] : memref<32x192xf32, #tpu.memory_space<vmem>>, vector<32x192xf32>
    %2 = vector.extract_strided_slice %1 {offsets = [0, 0], sizes = [32, 96], strides = [1, 1]} : vector<32x192xf32> to vector<32x96xf32>
    %3 = vector.extract_strided_slice %1 {offsets = [0, 96], sizes = [32, 32], strides = [1, 1]} : vector<32x192xf32> to vector<32x32xf32>
    %4 = vector.extract_strided_slice %1 {offsets = [0, 128], sizes = [32, 64], strides = [1, 1]} : vector<32x192xf32> to vector<32x64xf32>
    %c0_3 = arith.constant 0 : index
    %c0_4 = arith.constant 0 : index
    %5 = vector.load %arg4[%c0_3, %c0_4] : memref<24x128xf32, #tpu.memory_space<vmem>>, vector<24x128xf32>
    %6 = vector.extract_strided_slice %5 {offsets = [0, 0], sizes = [1, 32], strides = [1, 1]} : vector<24x128xf32> to vector<1x32xf32>
    %7 = vector.shape_cast %6 : vector<1x32xf32> to vector<32xf32>
    %8 = vector.extract_strided_slice %5 {offsets = [1, 0], sizes = [1, 32], strides = [1, 1]} : vector<24x128xf32> to vector<1x32xf32>
    %9 = vector.shape_cast %8 : vector<1x32xf32> to vector<32xf32>
    %10 = vector.extract_strided_slice %5 {offsets = [2, 0], sizes = [1, 96], strides = [1, 1]} : vector<24x128xf32> to vector<1x96xf32>
    %11 = vector.shape_cast %10 : vector<1x96xf32> to vector<96xf32>
    %12 = vector.extract_strided_slice %5 {offsets = [3, 0], sizes = [1, 32], strides = [1, 1]} : vector<24x128xf32> to vector<1x32xf32>
    %13 = vector.shape_cast %12 : vector<1x32xf32> to vector<32xf32>
    %14 = vector.extract_strided_slice %5 {offsets = [4, 0], sizes = [1, 32], strides = [1, 1]} : vector<24x128xf32> to vector<1x32xf32>
    %15 = vector.shape_cast %14 : vector<1x32xf32> to vector<32xf32>
    %16 = vector.extract_strided_slice %5 {offsets = [5, 0], sizes = [1, 32], strides = [1, 1]} : vector<24x128xf32> to vector<1x32xf32>
    %17 = vector.shape_cast %16 : vector<1x32xf32> to vector<32xf32>
    %18 = vector.extract_strided_slice %5 {offsets = [6, 0], sizes = [1, 64], strides = [1, 1]} : vector<24x128xf32> to vector<1x64xf32>
    %19 = vector.shape_cast %18 : vector<1x64xf32> to vector<64xf32>
    %20 = vector.extract_strided_slice %5 {offsets = [7, 0], sizes = [1, 32], strides = [1, 1]} : vector<24x128xf32> to vector<1x32xf32>
    %21 = vector.shape_cast %20 : vector<1x32xf32> to vector<32xf32>
    %22 = vector.extract_strided_slice %5 {offsets = [8, 0], sizes = [16, 64], strides = [1, 1]} : vector<24x128xf32> to vector<16x64xf32>
    %cst = arith.constant dense<0.000000e+00> : vector<16xf32>
    %23 = vector.multi_reduction <add>, %0, %cst [1] : vector<16x32xf32> to vector<16xf32>
    %24 = vector.shape_cast %23 : vector<16xf32> to vector<16x1xf32>
    %cst_5 = arith.constant 3.200000e+01 : f32
    %25 = vector.broadcast %cst_5 : f32 to vector<16x1xf32>
    %26 = arith.divf %24, %25 : vector<16x1xf32>
    %27 = vector.broadcast %26 : vector<16x1xf32> to vector<16x32xf32>
    %28 = arith.subf %0, %27 : vector<16x32xf32>
    %29 = arith.mulf %28, %28 : vector<16x32xf32>
    %cst_6 = arith.constant dense<0.000000e+00> : vector<16xf32>
    %30 = vector.multi_reduction <add>, %29, %cst_6 [1] : vector<16x32xf32> to vector<16xf32>
    %31 = vector.shape_cast %30 : vector<16xf32> to vector<16x1xf32>
    %cst_7 = arith.constant 3.200000e+01 : f32
    %32 = vector.broadcast %cst_7 : f32 to vector<16x1xf32>
    %33 = arith.divf %31, %32 : vector<16x1xf32>
    %34 = vector.broadcast %26 : vector<16x1xf32> to vector<16x32xf32>
    %35 = arith.subf %0, %34 : vector<16x32xf32>
    %cst_8 = arith.constant 9.99999997E-7 : f32
    %36 = vector.broadcast %cst_8 : f32 to vector<16x1xf32>
    %37 = arith.addf %33, %36 : vector<16x1xf32>
    %38 = math.rsqrt %37 : vector<16x1xf32>
    %39 = vector.broadcast %38 : vector<16x1xf32> to vector<16x32xf32>
    %40 = arith.mulf %35, %39 : vector<16x32xf32>
    %41 = vector.shape_cast %7 : vector<32xf32> to vector<1x32xf32>
    %42 = vector.broadcast %41 : vector<1x32xf32> to vector<16x32xf32>
    %43 = arith.mulf %40, %42 : vector<16x32xf32>
    %44 = vector.shape_cast %9 : vector<32xf32> to vector<1x32xf32>
    %45 = vector.broadcast %44 : vector<1x32xf32> to vector<16x32xf32>
    %46 = arith.addf %43, %45 : vector<16x32xf32>
    %cst_9 = arith.constant dense<0.000000e+00> : vector<16x96xf32>
    %47 = tpu.matmul %46, %2, %cst_9 {dimension_numbers = #tpu.dot_dimension_numbers<[1], [0], [0], [1], [0, 0, 1, 1], [], []>} : vector<16x32xf32>, vector<32x96xf32>, vector<16x96xf32> -> vector<16x96xf32>
    %48 = vector.shape_cast %11 : vector<96xf32> to vector<1x96xf32>
    %49 = vector.broadcast %48 : vector<1x96xf32> to vector<16x96xf32>
    %50 = arith.addf %47, %49 : vector<16x96xf32>
    %51 = vector.extract_strided_slice %50 {offsets = [0, 0], sizes = [16, 32], strides = [1, 1]} : vector<16x96xf32> to vector<16x32xf32>
    %52 = vector.extract_strided_slice %50 {offsets = [0, 32], sizes = [16, 32], strides = [1, 1]} : vector<16x96xf32> to vector<16x32xf32>
    %53 = vector.extract_strided_slice %50 {offsets = [0, 64], sizes = [16, 32], strides = [1, 1]} : vector<16x96xf32> to vector<16x32xf32>
    %54 = tpu.iota {dimensions = array<i32: 0>} : vector<64x32xi32>
    %c4_i32 = arith.constant 4 : i32
    %55 = vector.broadcast %c4_i32 : i32 to vector<64x32xi32>
    %56 = arith.shrsi %54, %55 : vector<64x32xi32>
    %57 = tpu.iota {dimensions = array<i32: 1>} : vector<64x32xi32>
    %c3_i32 = arith.constant 3 : i32
    %58 = vector.broadcast %c3_i32 : i32 to vector<64x32xi32>
    %59 = arith.shrsi %57, %58 : vector<64x32xi32>
    %60 = arith.cmpi eq, %56, %59 : vector<64x32xi32>
    %61 = arith.extui %60 : vector<64x32xi1> to vector<64x32xi32>
    %62 = arith.sitofp %61 : vector<64x32xi32> to vector<64x32xf32>
    %63 = tpu.concatenate %52, %52, %52, %52 in 0 : vector<16x32xf32>, vector<16x32xf32>, vector<16x32xf32>, vector<16x32xf32> -> vector<64x32xf32>
    %64 = arith.mulf %63, %62 : vector<64x32xf32>
    %65 = tpu.concatenate %53, %53, %53, %53 in 0 : vector<16x32xf32>, vector<16x32xf32>, vector<16x32xf32>, vector<16x32xf32> -> vector<64x32xf32>
    %66 = arith.mulf %65, %62 : vector<64x32xf32>
    %cst_10 = arith.constant dense<0.000000e+00> : vector<16x64xf32>
    %67 = tpu.matmul %51, %64, %cst_10 {dimension_numbers = #tpu.dot_dimension_numbers<[1], [1], [0], [0], [0, 0, 1, 0], [], []>} : vector<16x32xf32>, vector<64x32xf32>, vector<16x64xf32> -> vector<16x64xf32>
    %68 = arith.addf %67, %22 : vector<16x64xf32>
    %cst_11 = arith.constant dense<0xFF800000> : vector<16xf32>
    %69 = vector.multi_reduction <maximumf>, %68, %cst_11 [1] : vector<16x64xf32> to vector<16xf32>
    %70 = vector.shape_cast %69 : vector<16xf32> to vector<16x1xf32>
    %71 = vector.broadcast %70 : vector<16x1xf32> to vector<16x64xf32>
    %72 = arith.subf %68, %71 : vector<16x64xf32>
    %73 = math.exp %72 : vector<16x64xf32>
    %cst_12 = arith.constant dense<0.000000e+00> : vector<16x32xf32>
    %74 = tpu.matmul %73, %66, %cst_12 {dimension_numbers = #tpu.dot_dimension_numbers<[1], [0], [0], [1], [0, 0, 1, 1], [], []>} : vector<16x64xf32>, vector<64x32xf32>, vector<16x32xf32> -> vector<16x32xf32>
    %cst_13 = arith.constant dense<0.000000e+00> : vector<16x32xf32>
    %75 = tpu.matmul %73, %62, %cst_13 {dimension_numbers = #tpu.dot_dimension_numbers<[1], [0], [0], [1], [0, 0, 1, 1], [], []>} : vector<16x64xf32>, vector<64x32xf32>, vector<16x32xf32> -> vector<16x32xf32>
    %76 = tpu.reciprocal %75 : vector<16x32xf32> -> vector<16x32xf32>
    %77 = arith.mulf %74, %76 : vector<16x32xf32>
    %cst_14 = arith.constant dense<0.000000e+00> : vector<16x32xf32>
    %78 = tpu.matmul %77, %3, %cst_14 {dimension_numbers = #tpu.dot_dimension_numbers<[1], [0], [0], [1], [0, 0, 1, 1], [], []>} : vector<16x32xf32>, vector<32x32xf32>, vector<16x32xf32> -> vector<16x32xf32>
    %79 = vector.shape_cast %13 : vector<32xf32> to vector<1x32xf32>
    %80 = vector.broadcast %79 : vector<1x32xf32> to vector<16x32xf32>
    %81 = arith.addf %78, %80 : vector<16x32xf32>
    %82 = arith.addf %81, %0 : vector<16x32xf32>
    %cst_15 = arith.constant dense<0.000000e+00> : vector<16xf32>
    %83 = vector.multi_reduction <add>, %82, %cst_15 [1] : vector<16x32xf32> to vector<16xf32>
    %84 = vector.shape_cast %83 : vector<16xf32> to vector<16x1xf32>
    %cst_16 = arith.constant 3.200000e+01 : f32
    %85 = vector.broadcast %cst_16 : f32 to vector<16x1xf32>
    %86 = arith.divf %84, %85 : vector<16x1xf32>
    %87 = vector.broadcast %86 : vector<16x1xf32> to vector<16x32xf32>
    %88 = arith.subf %82, %87 : vector<16x32xf32>
    %89 = arith.mulf %88, %88 : vector<16x32xf32>
    %cst_17 = arith.constant dense<0.000000e+00> : vector<16xf32>
    %90 = vector.multi_reduction <add>, %89, %cst_17 [1] : vector<16x32xf32> to vector<16xf32>
    %91 = vector.shape_cast %90 : vector<16xf32> to vector<16x1xf32>
    %cst_18 = arith.constant 3.200000e+01 : f32
    %92 = vector.broadcast %cst_18 : f32 to vector<16x1xf32>
    %93 = arith.divf %91, %92 : vector<16x1xf32>
    %94 = vector.broadcast %86 : vector<16x1xf32> to vector<16x32xf32>
    %95 = arith.subf %82, %94 : vector<16x32xf32>
    %cst_19 = arith.constant 9.99999997E-7 : f32
    %96 = vector.broadcast %cst_19 : f32 to vector<16x1xf32>
    %97 = arith.addf %93, %96 : vector<16x1xf32>
    %98 = math.rsqrt %97 : vector<16x1xf32>
    %99 = vector.broadcast %98 : vector<16x1xf32> to vector<16x32xf32>
    %100 = arith.mulf %95, %99 : vector<16x32xf32>
    %101 = vector.shape_cast %15 : vector<32xf32> to vector<1x32xf32>
    %102 = vector.broadcast %101 : vector<1x32xf32> to vector<16x32xf32>
    %103 = arith.mulf %100, %102 : vector<16x32xf32>
    %104 = vector.shape_cast %17 : vector<32xf32> to vector<1x32xf32>
    %105 = vector.broadcast %104 : vector<1x32xf32> to vector<16x32xf32>
    %106 = arith.addf %103, %105 : vector<16x32xf32>
    %cst_20 = arith.constant dense<0.000000e+00> : vector<16x64xf32>
    %107 = tpu.matmul %106, %4, %cst_20 {dimension_numbers = #tpu.dot_dimension_numbers<[1], [0], [0], [1], [0, 0, 1, 1], [], []>} : vector<16x32xf32>, vector<32x64xf32>, vector<16x64xf32> -> vector<16x64xf32>
    %108 = vector.shape_cast %19 : vector<64xf32> to vector<1x64xf32>
    %109 = vector.broadcast %108 : vector<1x64xf32> to vector<16x64xf32>
    %110 = arith.addf %107, %109 : vector<16x64xf32>
    %cst_21 = arith.constant 0.000000e+00 : f32
    %111 = vector.broadcast %cst_21 : f32 to vector<16x64xf32>
    %112 = arith.maximumf %110, %111 : vector<16x64xf32>
    %c0_22 = arith.constant 0 : index
    %c0_23 = arith.constant 0 : index
    %113 = vector.load %arg3[%c0_22, %c0_23] : memref<64x32xf32, #tpu.memory_space<vmem>>, vector<64x32xf32>
    %cst_24 = arith.constant dense<0.000000e+00> : vector<16x32xf32>
    %114 = tpu.matmul %112, %113, %cst_24 {dimension_numbers = #tpu.dot_dimension_numbers<[1], [0], [0], [1], [0, 0, 1, 1], [], []>} : vector<16x64xf32>, vector<64x32xf32>, vector<16x32xf32> -> vector<16x32xf32>
    %115 = vector.shape_cast %21 : vector<32xf32> to vector<1x32xf32>
    %116 = vector.broadcast %115 : vector<1x32xf32> to vector<16x32xf32>
    %117 = arith.addf %114, %116 : vector<16x32xf32>
    %118 = arith.addf %117, %82 : vector<16x32xf32>
    %c0_25 = arith.constant 0 : index
    %c0_26 = arith.constant 0 : index
    %119 = vector.load %arg5[%c0_25, %c0_26] : memref<16x32xf32, #tpu.memory_space<vmem>>, vector<16x32xf32>
    tpu.vector_store %arg5[%c0_25, %c0_26], %118 {strides = array<i32>} : memref<16x32xf32, #tpu.memory_space<vmem>>, vector<16x32xf32>,
    return
  }
  func.func @transform_0(%arg0: i32) -> (i32, i32) {
    %c0_i32 = arith.constant 0 : i32
    %c0_i32_0 = arith.constant 0 : i32
    %c0_i32_1 = arith.constant 0 : i32
    return %c0_i32, %c0_i32_0 : i32, i32
  }
  func.func @transform_1(%arg0: i32) -> (i32, i32) {
    %c0_i32 = arith.constant 0 : i32
    %c0_i32_0 = arith.constant 0 : i32
    %c0_i32_1 = arith.constant 0 : i32
    return %c0_i32, %c0_i32_0 : i32, i32
  }
  func.func @transform_2(%arg0: i32) -> (i32, i32) {
    %c0_i32 = arith.constant 0 : i32
    %c0_i32_0 = arith.constant 0 : i32
    %c0_i32_1 = arith.constant 0 : i32
    return %c0_i32, %c0_i32_0 : i32, i32
  }
  func.func @transform_3(%arg0: i32) -> (i32, i32) {
    %c0_i32 = arith.constant 0 : i32
    %c0_i32_0 = arith.constant 0 : i32
    %c0_i32_1 = arith.constant 0 : i32
    return %c0_i32, %c0_i32_0 : i32, i32
  }
  func.func @transform_4(%arg0: i32) -> (i32, i32) {
    %c0_i32 = arith.constant 0 : i32
    %c0_i32_0 = arith.constant 0 : i32
    %c0_i32_1 = arith.constant 0 : i32
    return %c0_i32, %c0_i32_0 : i32, i32
  }
}

</mosaic_0001>

<llo_original>
// kernel: tile.17
$region0: #{tile.17}
  %s0 = inlined_call_operand.vmem [shape: f32[16,4,16], index: 0, kind: input, shape index: {}]
  %s1 = inlined_call_operand.vmem [shape: f32[16,64], index: 1, kind: output, shape index: {}]
  $region1: #{tile.17} parent=0
    #allocation0 [shape = 'u8[65536]{0}', space=vmem, size = 0x10000, scoped, tag = 'scoped mem for input reshape']
    %s3 = sshllo.u32 0, 4
    %s4 = smul.addr 4, 15
    %s5 = scalar_lea.vmem %s0, %s4
    %v6 = vld [vmem:[%s5] sm:%s3]
    %s7 = scalar_lea.vmem [#allocation0], 120
    %8 = vst [vmem:[%s7] sm:%s3] %v6
    %s9 = smul.addr 4, 14
    %s10 = scalar_lea.vmem %s0, %s9
    %v11 = vld [vmem:[%s10] sm:%s3]
    %s12 = scalar_lea.vmem [#allocation0], 112
    %13 = vst [vmem:[%s12] sm:%s3] %v11
    %s14 = smul.addr 4, 13
    %s15 = scalar_lea.vmem %s0, %s14
    %v16 = vld [vmem:[%s15] sm:%s3]
    %s17 = scalar_lea.vmem [#allocation0], 104
    %18 = vst [vmem:[%s17] sm:%s3] %v16
    %s19 = smul.addr 4, 12
    %s20 = scalar_lea.vmem %s0, %s19
    %v21 = vld [vmem:[%s20] sm:%s3]
    %s22 = scalar_lea.vmem [#allocation0], 96
    %23 = vst [vmem:[%s22] sm:%s3] %v21
    %s24 = smul.addr 4, 11
    %s25 = scalar_lea.vmem %s0, %s24
    %v26 = vld [vmem:[%s25] sm:%s3]
    %s27 = scalar_lea.vmem [#allocation0], 88
    %28 = vst [vmem:[%s27] sm:%s3] %v26
    %s29 = smul.addr 4, 10
    %s30 = scalar_lea.vmem %s0, %s29
    %v31 = vld [vmem:[%s30] sm:%s3]
    %s32 = scalar_lea.vmem [#allocation0], 80
    %33 = vst [vmem:[%s32] sm:%s3] %v31
    %s34 = smul.addr 4, 9
    %s35 = scalar_lea.vmem %s0, %s34
    %v36 = vld [vmem:[%s35] sm:%s3]
    %s37 = scalar_lea.vmem [#allocation0], 72
    %38 = vst [vmem:[%s37] sm:%s3] %v36
    %s39 = smul.addr 4, 8
    %s40 = scalar_lea.vmem %s0, %s39
    %v41 = vld [vmem:[%s40] sm:%s3]
    %s42 = scalar_lea.vmem [#allocation0], 64
    %43 = vst [vmem:[%s42] sm:%s3] %v41
    %s44 = smul.addr 4, 7
    %s45 = scalar_lea.vmem %s0, %s44
    %v46 = vld [vmem:[%s45] sm:%s3]
    %s47 = scalar_lea.vmem [#allocation0], 56
    %48 = vst [vmem:[%s47] sm:%s3] %v46
    %s49 = smul.addr 4, 6
    %s50 = scalar_lea.vmem %s0, %s49
    %v51 = vld [vmem:[%s50] sm:%s3]
    %s52 = scalar_lea.vmem [#allocation0], 48
    %53 = vst [vmem:[%s52] sm:%s3] %v51
    %s54 = smul.addr 4, 5
    %s55 = scalar_lea.vmem %s0, %s54
    %v56 = vld [vmem:[%s55] sm:%s3]
    %s57 = scalar_lea.vmem [#allocation0], 40
    %58 = vst [vmem:[%s57] sm:%s3] %v56
    %s59 = smul.addr 4, 4
    %s60 = scalar_lea.vmem %s0, %s59
    %v61 = vld [vmem:[%s60] sm:%s3]
    %s62 = scalar_lea.vmem [#allocation0], 32
    %63 = vst [vmem:[%s62] sm:%s3] %v61
    %s64 = smul.addr 4, 3
    %s65 = scalar_lea.vmem %s0, %s64
    %v66 = vld [vmem:[%s65] sm:%s3]
    %s67 = scalar_lea.vmem [#allocation0], 24
    %68 = vst [vmem:[%s67] sm:%s3] %v66
    %s69 = smul.addr 4, 2
    %s70 = scalar_lea.vmem %s0, %s69
    %v71 = vld [vmem:[%s70] sm:%s3]
    %s72 = scalar_lea.vmem [#allocation0], 16
    %73 = vst [vmem:[%s72] sm:%s3] %v71
    %s74 = scalar_lea.vmem %s0, 4
    %v75 = vld [vmem:[%s74] sm:%s3]
    %s76 = scalar_lea.vmem [#allocation0], 8
    %77 = vst [vmem:[%s76] sm:%s3] %v75
    %v78 = vld [vmem:[%s0] sm:%s3]
    %79 = vst [vmem:[#allocation0] sm:%s3] %v78
    %v80 = vld [vmem:[#allocation0] ss:$8 sm:$0xf]
    %v81 = vld [vmem:[#allocation0] ss:$8 sm:$0xf0]
    %vm82 = vcmask 1047556
    %v83 = vsel %vm82, %v81, %v80
    %vm84 = vcmask 130048
    %85 = vst.msk [vmem:[%s1] sm:$0xff] %vm84, %v83
    %s86 = scalar_lea.vmem [#allocation0], 64
    %v87 = vld [vmem:[%s86] ss:$8 sm:$0xf]
    %s88 = scalar_lea.vmem [#allocation0], 64
    %v89 = vld [vmem:[%s88] ss:$8 sm:$0xf0]
    %vm90 = vcmask 1047556
    %v91 = vsel %vm90, %v89, %v87
    %vm92 = vcmask 130048
    %s93 = scalar_lea.vmem %s1, 8
    %94 = vst.msk [vmem:[%s93] sm:$0xff] %vm92, %v91
    %s95 = scalar_lea.vmem [#allocation0], 3
    %v96 = vld [vmem:[%s95] ss:$8 sm:$0xf]
    %s97 = scalar_lea.vmem [#allocation0], 3
    %v98 = vld [vmem:[%s97] ss:$8 sm:$0xf0]
    %vm99 = vcmask 1047556
    %v100 = vsel %vm99, %v98, %v96
    %101 = vrot.lane.b32.xlu0 %v100, 48
    %v102 = vpop.permute.xlu0 %101
    %vm103 = vcmask 523648
    %104 = vst.msk [vmem:[%s1] sm:$0xff] %vm103, %v102
    %s105 = scalar_lea.vmem [#allocation0], 67
    %v106 = vld [vmem:[%s105] ss:$8 sm:$0xf]
    %s107 = scalar_lea.vmem [#allocation0], 67
    %v108 = vld [vmem:[%s107] ss:$8 sm:$0xf0]
    %vm109 = vcmask 1047556
    %v110 = vsel %vm109, %v108, %v106
    %111 = vrot.lane.b32.xlu0 %v110, 48
    %v112 = vpop.permute.xlu0 %111
    %vm113 = vcmask 523648
    %s114 = scalar_lea.vmem %s1, 8
    %115 = vst.msk [vmem:[%s114] sm:$0xff] %vm113, %v112
    %s116 = scalar_lea.vmem [#allocation0], 2
    %v117 = vld [vmem:[%s116] ss:$8 sm:$0xf]
    %s118 = scalar_lea.vmem [#allocation0], 2
    %v119 = vld [vmem:[%s118] ss:$8 sm:$0xf0]
    %vm120 = vcmask 1047556
    %v121 = vsel %vm120, %v119, %v117
    %122 = vrot.lane.b32.xlu0 %v121, 32
    %v123 = vpop.permute.xlu0 %122
    %vm124 = vcmask 392448
    %125 = vst.msk [vmem:[%s1] sm:$0xff] %vm124, %v123
    %s126 = scalar_lea.vmem [#allocation0], 66
    %v127 = vld [vmem:[%s126] ss:$8 sm:$0xf]
    %s128 = scalar_lea.vmem [#allocation0], 66
    %v129 = vld [vmem:[%s128] ss:$8 sm:$0xf0]
    %vm130 = vcmask 1047556
    %v131 = vsel %vm130, %v129, %v127
    %132 = vrot.lane.b32.xlu0 %v131, 32
    %v133 = vpop.permute.xlu0 %132
    %vm134 = vcmask 392448
    %s135 = scalar_lea.vmem %s1, 8
    %136 = vst.msk [vmem:[%s135] sm:$0xff] %vm134, %v133
    %s137 = scalar_lea.vmem [#allocation0], 1
    %v138 = vld [vmem:[%s137] ss:$8 sm:$0xf]
    %s139 = scalar_lea.vmem [#allocation0], 1
    %v140 = vld [vmem:[%s139] ss:$8 sm:$0xf0]
    %vm141 = vcmask 1047556
    %v142 = vsel %vm141, %v140, %v138
    %143 = vrot.lane.b32.xlu0 %v142, 16
    %v144 = vpop.permute.xlu0 %143
    %vm145 = vcmask 261248
    %146 = vst.msk [vmem:[%s1] sm:$0xff] %vm145, %v144
    %s147 = scalar_lea.vmem [#allocation0], 65
    %v148 = vld [vmem:[%s147] ss:$8 sm:$0xf]
    %s149 = scalar_lea.vmem [#allocation0], 65
    %v150 = vld [vmem:[%s149] ss:$8 sm:$0xf0]
    %vm151 = vcmask 1047556
    %v152 = vsel %vm151, %v150, %v148
    %153 = vrot.lane.b32.xlu0 %v152, 16
    %v154 = vpop.permute.xlu0 %153
    %vm155 = vcmask 261248
    %s156 = scalar_lea.vmem %s1, 8
    %157 = vst.msk [vmem:[%s156] sm:$0xff] %vm155, %v154

// kernel: transformer_encoder_layer.1
$region0: #{transformer_encoder_layer.1}
  #allocation0 [shape = 'u32[]', space=smem, size = 0x4, offset = 0x4, fixed_abs, tag = 'smem constant byte address 0x4 - core index']
  #allocation1 [shape = 'u32[144,128]{1,0:T(1,128)}', space=vmem, size = 0x12000, scoped, tag = 'internal scratch']
  %s0 = inlined_call_operand.vmem [shape: f32[16,32], index: 0, kind: input, shape index: {}]
  %s1 = inlined_call_operand.vmem [shape: f32[32,192], index: 1, kind: input, shape index: {}]
  %s2 = inlined_call_operand.vmem [shape: f32[64,32], index: 2, kind: input, shape index: {}]
  %s3 = inlined_call_operand.vmem [shape: f32[24,128], index: 3, kind: input, shape index: {}]
  %s4 = inlined_call_operand.hbm [shape: f32[16,32], index: 4, kind: output, shape index: {}]
  %s5 = sld [smem:[#allocation0]]
  $region26: #{transformer_encoder_layer.1} parent=0
    _
  %s7 = ssub.s32 1, %s5
  %s8 = scalar_select 0, %s7, %s5
  $region1: #{transformer_encoder_layer.1} parent=0
    #allocation2 [shape = 'u8[8192]{0}', space=vmem, size = 0x2000, scoped, tag = 'output window, operand 0, single buffered']
    #allocation3 [shape = 's32[1]{0}', space=sflag, size = 0x4, scoped, tag = 'scoped memory for transformer_encoder_layer.1']
    %9 = vsyncpa [#allocation3], 0
    // Predicated region
    $region2: #{transformer_encoder_layer.1} parent=1 // pred_check
      _
    $region3: #{transformer_encoder_layer.1} parent=1 // pred_check_branch
      %11 = sbr.rel (0) target = $region5
    $region4: #{transformer_encoder_layer.1} parent=1 // pred_region
      _
    $region5: #{transformer_encoder_layer.1} parent=1 // pred_fallthru
      _
    // Predicated region
    $region6: #{transformer_encoder_layer.1} parent=1 // pred_check
      _
    $region7: #{transformer_encoder_layer.1} parent=1 // pred_check_branch
      %13 = sbr.rel (0) target = $region9
    $region8: #{transformer_encoder_layer.1} parent=1 // pred_region
      _
    $region9: #{transformer_encoder_layer.1} parent=1 // pred_fallthru
      _
    // Predicated region
    $region10: #{transformer_encoder_layer.1} parent=1 // pred_check
      _
    $region11: #{transformer_encoder_layer.1} parent=1 // pred_check_branch
      %15 = sbr.rel (0) target = $region13
    $region12: #{transformer_encoder_layer.1} parent=1 // pred_region
      _
    $region13: #{transformer_encoder_layer.1} parent=1 // pred_fallthru
      _
    // Predicated region
    $region14: #{transformer_encoder_layer.1} parent=1 // pred_check
      _
    $region15: #{transformer_encoder_layer.1} parent=1 // pred_check_branch
      %17 = sbr.rel (0) target = $region17
    $region16: #{transformer_encoder_layer.1} parent=1 // pred_region
      _
    $region17: #{transformer_encoder_layer.1} parent=1 // pred_fallthru
      _
    %v18 = vld [vmem:[%s0] sm:$0xff]
    %v19 = vld [vmem:[%s0 + $0x8] sm:$0xff]
    %v20 = vld [vmem:[%s1] sm:$0xff]
    %v21 = vld [vmem:[%s1 + $0x8] sm:$0xff]
    %v22 = vld [vmem:[%s1 + $0x10] sm:$0xff]
    %v23 = vld [vmem:[%s1 + $0x18] sm:$0xff]
    %v24 = vld [vmem:[%s1 + $0x20] sm:$0xff]
    %v25 = vld [vmem:[%s1 + $0x28] sm:$0xff]
    %v26 = vld [vmem:[%s1 + $0x30] sm:$0xff]
    %v27 = vld [vmem:[%s1 + $0x38] sm:$0xff]
    %v28 = vld [vmem:[%s3] sm:$0xff]
    %v29 = vld [vmem:[%s3 + $0x8] sm:$0xff]
    %v30 = vld [vmem:[%s3 + $0x10] sm:$0xff]
    %vm31 = vcmask 261120
    %v32 = vsel %vm31, %v18, 0.0
    %33 = vadd.xlane.f32.xlu0 %v32
    %v34 = vpop.xlane.xlu0 %33
    %v35 = vsel %vm31, %v19, 0.0
    %36 = vadd.xlane.f32.xlu0 %v35
    %v37 = vpop.xlane.xlu0 %36
    %v38 = vrcp.pop 32.0
    %v39 = vmul.f32 %v34, %v38
    %v40 = vmul.f32 %v37, %v38
    %v41 = vsub.f32 %v18, %v39
    %v42 = vsub.f32 %v19, %v40
    %v43 = vmul.f32 %v41, %v41
    %v44 = vmul.f32 %v42, %v42
    %v45 = vsel %vm31, %v43, 0.0
    %46 = vadd.xlane.f32.xlu0 %v45
    %v47 = vpop.xlane.xlu0 %46
    %v48 = vsel %vm31, %v44, 0.0
    %49 = vadd.xlane.f32.xlu0 %v48
    %v50 = vpop.xlane.xlu0 %49
    %v51 = vmul.f32 %v47, %v38
    %v52 = vmul.f32 %v50, %v38
    %v53 = vadd.f32 %v51, 1e-06
    %v54 = vadd.f32 %v52, 1e-06
    %v55 = vrsqrt.pop %v53
    %v56 = vrsqrt.pop %v54
    %v57 = vmul.f32 %v41, %v55
    %v58 = vmul.f32 %v42, %v56
    %v59 = vlaneseq
    %v60 = vshrl.u32 %v59, 7
    %v61 = vsub.s32 0, %v60
    %v62 = vrot.slane %v28, %v61
    %v63 = vmul.f32 %v57, %v62
    %v64 = vmul.f32 %v58, %v62
    %v65 = vlaneseq
    %v66 = vshrl.u32 %v65, 7
    %v67 = vsub.s32 1, %v66
    %v68 = vrot.slane %v28, %v67
    %v69 = vadd.f32 %v63, %v68
    %v70 = vadd.f32 %v64, %v68
    %v71 = vlaneseq
    %v72 = vshrl.u32 %v71, 7
    %v73 = vsub.s32 2, %v72
    %v74 = vrot.slane %v28, %v73
    %v76 = vsel %vm31, %v69, 0
    %v79 = vsel %vm31, %v70, 0
    %81 = vmatprep.subr.mxu0 0.0
    %82 = vmatpush1.msra.mxu0 %v20
    %83 = vmatprep.subr.mxu0 0.0
    %84 = vmatpush1.msra.mxu0 %v22
    %85 = vmatprep.subr.mxu0 0.0
    %86 = vmatpush1.msra.mxu0 %v24
    %87 = vmatprep.subr.mxu0 0.0
    %88 = vmatpush1.msra.mxu0 %v26
    %89 = vmatprep.subr.mxu0 0.0
    %90 = vmatpush1.msra.mxu0 0.0
    %91 = vmatprep.subr.mxu0 0.0
    %92 = vmatpush1.msra.mxu0 0.0
    %93 = vmatprep.subr.mxu0 0.0
    %94 = vmatpush1.msra.mxu0 0.0
    %95 = vmatprep.subr.mxu0 0.0
    %96 = vmatpush1.msra.mxu0 0.0
    %97 = vmatprep.subr.mxu0 0.0
    %98 = vmatpush1.msra.mxu0 0.0
    %99 = vmatprep.subr.mxu0 0.0
    %100 = vmatpush1.msra.mxu0 0.0
    %101 = vmatprep.subr.mxu0 0.0
    %102 = vmatpush1.msra.mxu0 0.0
    %103 = vmatprep.subr.mxu0 0.0
    %104 = vmatpush1.msra.mxu0 0.0
    %105 = vmatprep.subr.mxu0 0.0
    %106 = vmatpush1.msra.mxu0 0.0
    %107 = vmatprep.subr.mxu0 0.0
    %108 = vmatpush1.msra.mxu0 0.0
    %109 = vmatprep.subr.mxu0 0.0
    %110 = vmatpush1.msra.mxu0 0.0
    %111 = vmatprep.subr.mxu0 0.0
    %112 = vmatpush1.msra.mxu0 0.0
    %113 = vmatprep.subr.mxu0 0.0
    %114 = vmatpush1.msra.mxu0 0.0
    %115 = vmatprep.subr.mxu0 0.0
    %116 = vmatpush1.msra.mxu0 0.0
    %117 = vmatprep.subr.mxu0 0.0
    %118 = vmatpush1.msra.mxu0 0.0
    %119 = vmatprep.subr.mxu0 0.0
    %120 = vmatpush1.msra.mxu0 0.0
    %121 = vmatprep.subr.mxu0 0.0
    %122 = vmatpush1.msra.mxu0 0.0
    %123 = vmatprep.subr.mxu0 0.0
    %124 = vmatpush1.msra.mxu0 0.0
    %125 = vmatprep.subr.mxu0 0.0
    %126 = vmatpush1.msra.mxu0 0.0
    %127 = vmatprep.subr.mxu0 0.0
    %128 = vmatpush1.msra.mxu0 0.0
    %129 = vmatprep.subr.mxu0 0.0
    %130 = vmatpush1.msra.mxu0 0.0
    %131 = vmatprep.subr.mxu0 0.0
    %132 = vmatpush1.msra.mxu0 0.0
    %133 = vmatprep.subr.mxu0 0.0
    %134 = vmatpush1.msra.mxu0 0.0
    %135 = vmatprep.subr.mxu0 0.0
    %136 = vmatpush1.msra.mxu0 0.0
    %137 = vmatprep.subr.mxu0 0.0
    %138 = vmatpush1.msra.mxu0 0.0
    %139 = vmatprep.subr.mxu0 0.0
    %140 = vmatpush1.msra.mxu0 0.0
    %141 = vmatprep.subr.mxu0 0.0
    %142 = vmatpush1.msra.mxu0 0.0
    %143 = vmatprep.subr.mxu0 0.0
    %144 = vmatpush1.msra.mxu0 0.0
    %145 = vmatprep.mubr.f32.mxu0 0.0
    %146 = vmatmul.mubr.f32.gmra.mrb[0].mxu0 %v76
    %v147 = vpop.f32.mrb[0].mxu0
    %v148 = vadd.f32 %v74, %v147
    %v149 = vpop.f32.mrb[0].mxu0
    %150 = vmatprep.mubr.f32.mxu0 0.0
    %151 = vmatmul.mubr.f32.gmra.mrb[0].mxu0 %v79
    %v152 = vpop.f32.mrb[0].mxu0
    %v153 = vadd.f32 %v74, %v152
    %v154 = vpop.f32.mrb[0].mxu0
    %155 = vdwg.mxu0
    %v156 = vlaneseq
    %v157 = vshrl.u32 %v156, 7
    %v158 = vadd.s32 %v157, 8
    %v159 = vadd.s32 %v157, 16
    %v160 = vadd.s32 %v157, 24
    %v161 = vadd.s32 %v157, 32
    %v162 = vadd.s32 %v157, 40
    %v163 = vadd.s32 %v157, 48
    %v164 = vadd.s32 %v157, 56
    %v165 = vshra.s32 %v157, 4
    %v166 = vshra.s32 %v158, 4
    %v167 = vshra.s32 %v159, 4
    %v168 = vshra.s32 %v160, 4
    %v169 = vshra.s32 %v161, 4
    %v170 = vshra.s32 %v162, 4
    %v171 = vshra.s32 %v163, 4
    %v172 = vshra.s32 %v164, 4
    %v173 = vlaneseq
    %v174 = vand.u32 %v173, 127
    %v175 = vshra.s32 %v174, 3
    %vm176 = vcmp.eq.s32.totalorder %v165, %v175
    %vm177 = vcmp.eq.s32.totalorder %v166, %v175
    %vm178 = vcmp.eq.s32.totalorder %v167, %v175
    %vm179 = vcmp.eq.s32.totalorder %v168, %v175
    %vm180 = vcmp.eq.s32.totalorder %v169, %v175
    %vm181 = vcmp.eq.s32.totalorder %v170, %v175
    %vm182 = vcmp.eq.s32.totalorder %v171, %v175
    %vm183 = vcmp.eq.s32.totalorder %v172, %v175
    %v184 = vsel %vm176, 1, 0
    %v185 = vsel %vm177, 1, 0
    %v186 = vsel %vm178, 1, 0
    %v187 = vsel %vm179, 1, 0
    %v188 = vsel %vm180, 1, 0
    %v189 = vsel %vm181, 1, 0
    %v190 = vsel %vm182, 1, 0
    %v191 = vsel %vm183, 1, 0
    %v192 = vcvt.s32.f32 %v184
    %v193 = vcvt.s32.f32 %v185
    %v194 = vcvt.s32.f32 %v186
    %v195 = vcvt.s32.f32 %v187
    %v196 = vcvt.s32.f32 %v188
    %v197 = vcvt.s32.f32 %v189
    %v198 = vcvt.s32.f32 %v190
    %v199 = vcvt.s32.f32 %v191
    %208 = vrot.lane.b32.xlu0 %v192, 32
    %v209 = vpop.permute.xlu0 %208
    %210 = vrot.lane.b32.xlu0 %v193, 32
    %v211 = vpop.permute.xlu0 %210
    %212 = vrot.lane.b32.xlu0 %v194, 32
    %v213 = vpop.permute.xlu0 %212
    %214 = vrot.lane.b32.xlu0 %v195, 32
    %v215 = vpop.permute.xlu0 %214
    %216 = vrot.lane.b32.xlu0 %v196, 32
    %v217 = vpop.permute.xlu0 %216
    %218 = vrot.lane.b32.xlu0 %v197, 32
    %v219 = vpop.permute.xlu0 %218
    %220 = vrot.lane.b32.xlu0 %v198, 32
    %v221 = vpop.permute.xlu0 %220
    %222 = vrot.lane.b32.xlu0 %v199, 32
    %v223 = vpop.permute.xlu0 %222
    %v232 = vmul.f32 %v148, %v209
    %v233 = vmul.f32 %v153, %v211
    %v234 = vmul.f32 %v148, %v213
    %v235 = vmul.f32 %v153, %v215
    %v236 = vmul.f32 %v148, %v217
    %v237 = vmul.f32 %v153, %v219
    %v238 = vmul.f32 %v148, %v221
    %v239 = vmul.f32 %v153, %v223
    %240 = vrot.lane.b32.xlu0 %v192, 64
    %v241 = vpop.permute.xlu0 %240
    %242 = vrot.lane.b32.xlu0 %v193, 64
    %v243 = vpop.permute.xlu0 %242
    %244 = vrot.lane.b32.xlu0 %v194, 64
    %v245 = vpop.permute.xlu0 %244
    %246 = vrot.lane.b32.xlu0 %v195, 64
    %v247 = vpop.permute.xlu0 %246
    %248 = vrot.lane.b32.xlu0 %v196, 64
    %v249 = vpop.permute.xlu0 %248
    %250 = vrot.lane.b32.xlu0 %v197, 64
    %v251 = vpop.permute.xlu0 %250
    %252 = vrot.lane.b32.xlu0 %v198, 64
    %v253 = vpop.permute.xlu0 %252
    %254 = vrot.lane.b32.xlu0 %v199, 64
    %v255 = vpop.permute.xlu0 %254
    %v264 = vmul.f32 %v148, %v241
    %v265 = vmul.f32 %v153, %v243
    %v266 = vmul.f32 %v148, %v245
    %v267 = vmul.f32 %v153, %v247
    %v268 = vmul.f32 %v148, %v249
    %v269 = vmul.f32 %v153, %v251
    %v270 = vmul.f32 %v148, %v253
    %v271 = vmul.f32 %v153, %v255
    %280 = vrot.lane.b32.xlu0 %v232, 96
    %v281 = vpop.permute.xlu0 %280
    %282 = vrot.lane.b32.xlu0 %v233, 96
    %v283 = vpop.permute.xlu0 %282
    %284 = vrot.lane.b32.xlu0 %v234, 96
    %v285 = vpop.permute.xlu0 %284
    %286 = vrot.lane.b32.xlu0 %v235, 96
    %v287 = vpop.permute.xlu0 %286
    %288 = vrot.lane.b32.xlu0 %v236, 96
    %v289 = vpop.permute.xlu0 %288
    %290 = vrot.lane.b32.xlu0 %v237, 96
    %v291 = vpop.permute.xlu0 %290
    %292 = vrot.lane.b32.xlu0 %v238, 96
    %v293 = vpop.permute.xlu0 %292
    %294 = vrot.lane.b32.xlu0 %v239, 96
    %v295 = vpop.permute.xlu0 %294
    %v297 = vsel %vm31, %v148, 0
    %v300 = vsel %vm31, %v153, 0
    %v302 = vsel %vm31, %v281, 0
    %v304 = vsel %vm31, %v283, 0
    %v306 = vsel %vm31, %v285, 0
    %v308 = vsel %vm31, %v287, 0
    %v310 = vsel %vm31, %v289, 0
    %v312 = vsel %vm31, %v291, 0
    %v314 = vsel %vm31, %v293, 0
    %v316 = vsel %vm31, %v295, 0
    %318 = vmatprep.subr.mxu0 0.0
    %319 = vmatpush1.xpose.msra.mxu0 %v302
    %320 = vmatprep.subr.mxu0 0.0
    %321 = vmatpush1.xpose.msra.mxu0 %v304
    %322 = vmatprep.subr.mxu0 0.0
    %323 = vmatpush1.xpose.msra.mxu0 %v306
    %324 = vmatprep.subr.mxu0 0.0
    %325 = vmatpush1.xpose.msra.mxu0 %v308
    %326 = vmatprep.subr.mxu0 0.0
    %327 = vmatpush1.xpose.msra.mxu0 %v310
    %328 = vmatprep.subr.mxu0 0.0
    %329 = vmatpush1.xpose.msra.mxu0 %v312
    %330 = vmatprep.subr.mxu0 0.0
    %331 = vmatpush1.xpose.msra.mxu0 %v314
    %332 = vmatprep.subr.mxu0 0.0
    %333 = vmatpush1.xpose.msra.mxu0 %v316
    %334 = vmatprep.subr.mxu0 0.0
    %335 = vmatpush1.xpose.msra.mxu0 0.0
    %336 = vmatprep.subr.mxu0 0.0
    %337 = vmatpush1.xpose.msra.mxu0 0.0
    %338 = vmatprep.subr.mxu0 0.0
    %339 = vmatpush1.xpose.msra.mxu0 0.0
    %340 = vmatprep.subr.mxu0 0.0
    %341 = vmatpush1.xpose.msra.mxu0 0.0
    %342 = vmatprep.subr.mxu0 0.0
    %343 = vmatpush1.xpose.msra.mxu0 0.0
    %344 = vmatprep.subr.mxu0 0.0
    %345 = vmatpush1.xpose.msra.mxu0 0.0
    %346 = vmatprep.subr.mxu0 0.0
    %347 = vmatpush1.xpose.msra.mxu0 0.0
    %348 = vmatprep.subr.mxu0 0.0
    %349 = vmatpush1.xpose.msra.mxu0 0.0
    %350 = vmatprep.subr.mxu0 0.0
    %351 = vmatpush1.xpose.msra.mxu0 0.0
    %352 = vmatprep.subr.mxu0 0.0
    %353 = vmatpush1.xpose.msra.mxu0 0.0
    %354 = vmatprep.subr.mxu0 0.0
    %355 = vmatpush1.xpose.msra.mxu0 0.0
    %356 = vmatprep.subr.mxu0 0.0
    %357 = vmatpush1.xpose.msra.mxu0 0.0
    %358 = vmatprep.subr.mxu0 0.0
    %359 = vmatpush1.xpose.msra.mxu0 0.0
    %360 = vmatprep.subr.mxu0 0.0
    %361 = vmatpush1.xpose.msra.mxu0 0.0
    %362 = vmatprep.subr.mxu0 0.0
    %363 = vmatpush1.xpose.msra.mxu0 0.0
    %364 = vmatprep.subr.mxu0 0.0
    %365 = vmatpush1.xpose.msra.mxu0 0.0
    %366 = vmatprep.subr.mxu0 0.0
    %367 = vmatpush1.xpose.msra.mxu0 0.0
    %368 = vmatprep.subr.mxu0 0.0
    %369 = vmatpush1.xpose.msra.mxu0 0.0
    %370 = vmatprep.subr.mxu0 0.0
    %371 = vmatpush1.xpose.msra.mxu0 0.0
    %372 = vmatprep.subr.mxu0 0.0
    %373 = vmatpush1.xpose.msra.mxu0 0.0
    %374 = vmatprep.subr.mxu0 0.0
    %375 = vmatpush1.xpose.msra.mxu0 0.0
    %376 = vmatprep.subr.mxu0 0.0
    %377 = vmatpush1.xpose.msra.mxu0 0.0
    %378 = vmatprep.subr.mxu0 0.0
    %379 = vmatpush1.xpose.msra.mxu0 0.0
    %380 = vmatprep.subr.mxu0 0.0
    %381 = vmatpush1.xpose.msra.mxu0 0.0
    %382 = vmatprep.mubr.f32.mxu0 0.0
    %383 = vmatmul.mubr.f32.gmra.mrb[0].mxu0 %v297
    %v384 = vpop.f32.mrb[0].mxu0
    %v385 = vadd.f32 %v29, %v384
    %v386 = vpop.f32.mrb[0].mxu0
    %387 = vmatprep.mubr.f32.mxu0 0.0
    %388 = vmatmul.mubr.f32.gmra.mrb[0].mxu0 %v300
    %v389 = vpop.f32.mrb[0].mxu0
    %v390 = vadd.f32 %v30, %v389
    %v391 = vpop.f32.mrb[0].mxu0
    %392 = vdwg.mxu0
    %vm393 = vcmask 523264
    %v394 = vsel %vm393, %v385, -inf
    %395 = vmax.xlane.f32.xlu0 %v394
    %v396 = vpop.xlane.xlu0 %395
    %v397 = vsel %vm393, %v390, -inf
    %398 = vmax.xlane.f32.xlu0 %v397
    %v399 = vpop.xlane.xlu0 %398
    %v400 = vsub.f32 %v385, %v396
    %v401 = vsub.f32 %v390, %v399
    %v402 = vmul.f32 %v400, 1.442695
    %v403 = vpow.pop %v402
    %v404 = vmul.f32 %v401, 1.442695
    %v405 = vpow.pop %v404
    %414 = vrot.lane.b32.xlu0 %v264, 64
    %v415 = vpop.permute.xlu0 %414
    %416 = vrot.lane.b32.xlu0 %v265, 64
    %v417 = vpop.permute.xlu0 %416
    %418 = vrot.lane.b32.xlu0 %v266, 64
    %v419 = vpop.permute.xlu0 %418
    %420 = vrot.lane.b32.xlu0 %v267, 64
    %v421 = vpop.permute.xlu0 %420
    %422 = vrot.lane.b32.xlu0 %v268, 64
    %v423 = vpop.permute.xlu0 %422
    %424 = vrot.lane.b32.xlu0 %v269, 64
    %v425 = vpop.permute.xlu0 %424
    %426 = vrot.lane.b32.xlu0 %v270, 64
    %v427 = vpop.permute.xlu0 %426
    %428 = vrot.lane.b32.xlu0 %v271, 64
    %v429 = vpop.permute.xlu0 %428
    %v439 = vsel %vm393, %v403, 0
    %v442 = vsel %vm393, %v405, 0
    %444 = vmatprep.subr.mxu0 0.0
    %445 = vmatpush1.msra.mxu0 %v415
    %446 = vmatprep.subr.mxu0 0.0
    %447 = vmatpush1.msra.mxu0 %v417
    %448 = vmatprep.subr.mxu0 0.0
    %449 = vmatpush1.msra.mxu0 %v419
    %450 = vmatprep.subr.mxu0 0.0
    %451 = vmatpush1.msra.mxu0 %v421
    %452 = vmatprep.subr.mxu0 0.0
    %453 = vmatpush1.msra.mxu0 %v423
    %454 = vmatprep.subr.mxu0 0.0
    %455 = vmatpush1.msra.mxu0 %v425
    %456 = vmatprep.subr.mxu0 0.0
    %457 = vmatpush1.msra.mxu0 %v427
    %458 = vmatprep.subr.mxu0 0.0
    %459 = vmatpush1.msra.mxu0 %v429
    %460 = vmatprep.subr.mxu0 0.0
    %461 = vmatpush1.msra.mxu0 0.0
    %462 = vmatprep.subr.mxu0 0.0
    %463 = vmatpush1.msra.mxu0 0.0
    %464 = vmatprep.subr.mxu0 0.0
    %465 = vmatpush1.msra.mxu0 0.0
    %466 = vmatprep.subr.mxu0 0.0
    %467 = vmatpush1.msra.mxu0 0.0
    %468 = vmatprep.subr.mxu0 0.0
    %469 = vmatpush1.msra.mxu0 0.0
    %470 = vmatprep.subr.mxu0 0.0
    %471 = vmatpush1.msra.mxu0 0.0
    %472 = vmatprep.subr.mxu0 0.0
    %473 = vmatpush1.msra.mxu0 0.0
    %474 = vmatprep.subr.mxu0 0.0
    %475 = vmatpush1.msra.mxu0 0.0
    %476 = vmatprep.subr.mxu0 0.0
    %477 = vmatpush1.msra.mxu0 0.0
    %478 = vmatprep.subr.mxu0 0.0
    %479 = vmatpush1.msra.mxu0 0.0
    %480 = vmatprep.subr.mxu0 0.0
    %481 = vmatpush1.msra.mxu0 0.0
    %482 = vmatprep.subr.mxu0 0.0
    %483 = vmatpush1.msra.mxu0 0.0
    %484 = vmatprep.subr.mxu0 0.0
    %485 = vmatpush1.msra.mxu0 0.0
    %486 = vmatprep.subr.mxu0 0.0
    %487 = vmatpush1.msra.mxu0 0.0
    %488 = vmatprep.subr.mxu0 0.0
    %489 = vmatpush1.msra.mxu0 0.0
    %490 = vmatprep.subr.mxu0 0.0
    %491 = vmatpush1.msra.mxu0 0.0
    %492 = vmatprep.subr.mxu0 0.0
    %493 = vmatpush1.msra.mxu0 0.0
    %494 = vmatprep.subr.mxu0 0.0
    %495 = vmatpush1.msra.mxu0 0.0
    %496 = vmatprep.subr.mxu0 0.0
    %497 = vmatpush1.msra.mxu0 0.0
    %498 = vmatprep.subr.mxu0 0.0
    %499 = vmatpush1.msra.mxu0 0.0
    %500 = vmatprep.subr.mxu0 0.0
    %501 = vmatpush1.msra.mxu0 0.0
    %502 = vmatprep.subr.mxu0 0.0
    %503 = vmatpush1.msra.mxu0 0.0
    %504 = vmatprep.subr.mxu0 0.0
    %505 = vmatpush1.msra.mxu0 0.0
    %506 = vmatprep.subr.mxu0 0.0
    %507 = vmatpush1.msra.mxu0 0.0
    %508 = vmatprep.mubr.f32.mxu0 0.0
    %509 = vmatmul.mubr.f32.gmra.mrb[0].mxu0 %v439
    %v510 = vpop.f32.mrb[0].mxu0
    %v511 = vadd.f32 0.0, %v510
    %v512 = vpop.f32.mrb[0].mxu0
    %513 = vmatprep.mubr.f32.mxu0 0.0
    %514 = vmatmul.mubr.f32.gmra.mrb[0].mxu0 %v442
    %v515 = vpop.f32.mrb[0].mxu0
    %v516 = vadd.f32 0.0, %v515
    %v517 = vpop.f32.mrb[0].mxu0
    %518 = vdwg.mxu0
    %519 = vmatprep.subr.mxu0 0.0
    %520 = vmatpush1.msra.mxu0 %v192
    %521 = vmatprep.subr.mxu0 0.0
    %522 = vmatpush1.msra.mxu0 %v193
    %523 = vmatprep.subr.mxu0 0.0
    %524 = vmatpush1.msra.mxu0 %v194
    %525 = vmatprep.subr.mxu0 0.0
    %526 = vmatpush1.msra.mxu0 %v195
    %527 = vmatprep.subr.mxu0 0.0
    %528 = vmatpush1.msra.mxu0 %v196
    %529 = vmatprep.subr.mxu0 0.0
    %530 = vmatpush1.msra.mxu0 %v197
    %531 = vmatprep.subr.mxu0 0.0
    %532 = vmatpush1.msra.mxu0 %v198
    %533 = vmatprep.subr.mxu0 0.0
    %534 = vmatpush1.msra.mxu0 %v199
    %535 = vmatprep.subr.mxu0 0.0
    %536 = vmatpush1.msra.mxu0 0.0
    %537 = vmatprep.subr.mxu0 0.0
    %538 = vmatpush1.msra.mxu0 0.0
    %539 = vmatprep.subr.mxu0 0.0
    %540 = vmatpush1.msra.mxu0 0.0
    %541 = vmatprep.subr.mxu0 0.0
    %542 = vmatpush1.msra.mxu0 0.0
    %543 = vmatprep.subr.mxu0 0.0
    %544 = vmatpush1.msra.mxu0 0.0
    %545 = vmatprep.subr.mxu0 0.0
    %546 = vmatpush1.msra.mxu0 0.0
    %547 = vmatprep.subr.mxu0 0.0
    %548 = vmatpush1.msra.mxu0 0.0
    %549 = vmatprep.subr.mxu0 0.0
    %550 = vmatpush1.msra.mxu0 0.0
    %551 = vmatprep.subr.mxu0 0.0
    %552 = vmatpush1.msra.mxu0 0.0
    %553 = vmatprep.subr.mxu0 0.0
    %554 = vmatpush1.msra.mxu0 0.0
    %555 = vmatprep.subr.mxu0 0.0
    %556 = vmatpush1.msra.mxu0 0.0
    %557 = vmatprep.subr.mxu0 0.0
    %558 = vmatpush1.msra.mxu0 0.0
    %559 = vmatprep.subr.mxu0 0.0
    %560 = vmatpush1.msra.mxu0 0.0
    %561 = vmatprep.subr.mxu0 0.0
    %562 = vmatpush1.msra.mxu0 0.0
    %563 = vmatprep.subr.mxu0 0.0
    %564 = vmatpush1.msra.mxu0 0.0
    %565 = vmatprep.subr.mxu0 0.0
    %566 = vmatpush1.msra.mxu0 0.0
    %567 = vmatprep.subr.mxu0 0.0
    %568 = vmatpush1.msra.mxu0 0.0
    %569 = vmatprep.subr.mxu0 0.0
    %570 = vmatpush1.msra.mxu0 0.0
    %571 = vmatprep.subr.mxu0 0.0
    %572 = vmatpush1.msra.mxu0 0.0
    %573 = vmatprep.subr.mxu0 0.0
    %574 = vmatpush1.msra.mxu0 0.0
    %575 = vmatprep.subr.mxu0 0.0
    %576 = vmatpush1.msra.mxu0 0.0
    %577 = vmatprep.subr.mxu0 0.0
    %578 = vmatpush1.msra.mxu0 0.0
    %579 = vmatprep.subr.mxu0 0.0
    %580 = vmatpush1.msra.mxu0 0.0
    %581 = vmatprep.subr.mxu0 0.0
    %582 = vmatpush1.msra.mxu0 0.0
    %583 = vmatprep.mubr.f32.mxu0 0.0
    %584 = vmatmul.mubr.f32.gmra.mrb[0].mxu0 %v439
    %v585 = vpop.f32.mrb[0].mxu0
    %v586 = vadd.f32 0.0, %v585
    %v587 = vpop.f32.mrb[0].mxu0
    %588 = vmatprep.mubr.f32.mxu0 0.0
    %589 = vmatmul.mubr.f32.gmra.mrb[0].mxu0 %v442
    %v590 = vpop.f32.mrb[0].mxu0
    %v591 = vadd.f32 0.0, %v590
    %v592 = vpop.f32.mrb[0].mxu0
    %593 = vdwg.mxu0
    %v594 = vrcp.pop %v586
    %v595 = vrcp.pop %v591
    %v596 = vmul.f32 %v511, %v594
    %v597 = vmul.f32 %v516, %v595
    %v598 = vlaneseq
    %v599 = vshrl.u32 %v598, 7
    %v600 = vsub.s32 3, %v599
    %v601 = vrot.slane %v28, %v600
    %606 = vrot.lane.b32.xlu0 %v20, 32
    %v607 = vpop.permute.xlu0 %606
    %608 = vrot.lane.b32.xlu0 %v22, 32
    %v609 = vpop.permute.xlu0 %608
    %610 = vrot.lane.b32.xlu0 %v24, 32
    %v611 = vpop.permute.xlu0 %610
    %612 = vrot.lane.b32.xlu0 %v26, 32
    %v613 = vpop.permute.xlu0 %612
    %v619 = vsel %vm31, %v596, 0
    %v622 = vsel %vm31, %v597, 0
    %624 = vmatprep.subr.mxu0 0.0
    %625 = vmatpush1.msra.mxu0 %v607
    %626 = vmatprep.subr.mxu0 0.0
    %627 = vmatpush1.msra.mxu0 %v609
    %628 = vmatprep.subr.mxu0 0.0
    %629 = vmatpush1.msra.mxu0 %v611
    %630 = vmatprep.subr.mxu0 0.0
    %631 = vmatpush1.msra.mxu0 %v613
    %632 = vmatprep.subr.mxu0 0.0
    %633 = vmatpush1.msra.mxu0 0.0
    %634 = vmatprep.subr.mxu0 0.0
    %635 = vmatpush1.msra.mxu0 0.0
    %636 = vmatprep.subr.mxu0 0.0
    %637 = vmatpush1.msra.mxu0 0.0
    %638 = vmatprep.subr.mxu0 0.0
    %639 = vmatpush1.msra.mxu0 0.0
    %640 = vmatprep.subr.mxu0 0.0
    %641 = vmatpush1.msra.mxu0 0.0
    %642 = vmatprep.subr.mxu0 0.0
    %643 = vmatpush1.msra.mxu0 0.0
    %644 = vmatprep.subr.mxu0 0.0
    %645 = vmatpush1.msra.mxu0 0.0
    %646 = vmatprep.subr.mxu0 0.0
    %647 = vmatpush1.msra.mxu0 0.0
    %648 = vmatprep.subr.mxu0 0.0
    %649 = vmatpush1.msra.mxu0 0.0
    %650 = vmatprep.subr.mxu0 0.0
    %651 = vmatpush1.msra.mxu0 0.0
    %652 = vmatprep.subr.mxu0 0.0
    %653 = vmatpush1.msra.mxu0 0.0
    %654 = vmatprep.subr.mxu0 0.0
    %655 = vmatpush1.msra.mxu0 0.0
    %656 = vmatprep.subr.mxu0 0.0
    %657 = vmatpush1.msra.mxu0 0.0
    %658 = vmatprep.subr.mxu0 0.0
    %659 = vmatpush1.msra.mxu0 0.0
    %660 = vmatprep.subr.mxu0 0.0
    %661 = vmatpush1.msra.mxu0 0.0
    %662 = vmatprep.subr.mxu0 0.0
    %663 = vmatpush1.msra.mxu0 0.0
    %664 = vmatprep.subr.mxu0 0.0
    %665 = vmatpush1.msra.mxu0 0.0
    %666 = vmatprep.subr.mxu0 0.0
    %667 = vmatpush1.msra.mxu0 0.0
    %668 = vmatprep.subr.mxu0 0.0
    %669 = vmatpush1.msra.mxu0 0.0
    %670 = vmatprep.subr.mxu0 0.0
    %671 = vmatpush1.msra.mxu0 0.0
    %672 = vmatprep.subr.mxu0 0.0
    %673 = vmatpush1.msra.mxu0 0.0
    %674 = vmatprep.subr.mxu0 0.0
    %675 = vmatpush1.msra.mxu0 0.0
    %676 = vmatprep.subr.mxu0 0.0
    %677 = vmatpush1.msra.mxu0 0.0
    %678 = vmatprep.subr.mxu0 0.0
    %679 = vmatpush1.msra.mxu0 0.0
    %680 = vmatprep.subr.mxu0 0.0
    %681 = vmatpush1.msra.mxu0 0.0
    %682 = vmatprep.subr.mxu0 0.0
    %683 = vmatpush1.msra.mxu0 0.0
    %684 = vmatprep.subr.mxu0 0.0
    %685 = vmatpush1.msra.mxu0 0.0
    %686 = vmatprep.subr.mxu0 0.0
    %687 = vmatpush1.msra.mxu0 0.0
    %688 = vmatprep.mubr.f32.mxu0 0.0
    %689 = vmatmul.mubr.f32.gmra.mrb[0].mxu0 %v619
    %v690 = vpop.f32.mrb[0].mxu0
    %v691 = vadd.f32 %v601, %v690
    %v692 = vpop.f32.mrb[0].mxu0
    %693 = vmatprep.mubr.f32.mxu0 0.0
    %694 = vmatmul.mubr.f32.gmra.mrb[0].mxu0 %v622
    %v695 = vpop.f32.mrb[0].mxu0
    %v696 = vadd.f32 %v601, %v695
    %v697 = vpop.f32.mrb[0].mxu0
    %698 = vdwg.mxu0
    %v699 = vadd.f32 %v691, %v18
    %v700 = vadd.f32 %v696, %v19
    %v701 = vsel %vm31, %v699, 0.0
    %702 = vadd.xlane.f32.xlu0 %v701
    %v703 = vpop.xlane.xlu0 %702
    %v704 = vsel %vm31, %v700, 0.0
    %705 = vadd.xlane.f32.xlu0 %v704
    %v706 = vpop.xlane.xlu0 %705
    %v707 = vmul.f32 %v703, %v38
    %v708 = vmul.f32 %v706, %v38
    %v709 = vsub.f32 %v699, %v707
    %v710 = vsub.f32 %v700, %v708
    %v711 = vmul.f32 %v709, %v709
    %v712 = vmul.f32 %v710, %v710
    %v713 = vsel %vm31, %v711, 0.0
    %714 = vadd.xlane.f32.xlu0 %v713
    %v715 = vpop.xlane.xlu0 %714
    %v716 = vsel %vm31, %v712, 0.0
    %717 = vadd.xlane.f32.xlu0 %v716
    %v718 = vpop.xlane.xlu0 %717
    %v719 = vmul.f32 %v715, %v38
    %v720 = vmul.f32 %v718, %v38
    %v721 = vadd.f32 %v719, 1e-06
    %v722 = vadd.f32 %v720, 1e-06
    %v723 = vrsqrt.pop %v721
    %v724 = vrsqrt.pop %v722
    %v725 = vmul.f32 %v709, %v723
    %v726 = vmul.f32 %v710, %v724
    %v727 = vlaneseq
    %v728 = vshrl.u32 %v727, 7
    %v729 = vsub.s32 4, %v728
    %v730 = vrot.slane %v28, %v729
    %v731 = vmul.f32 %v725, %v730
    %v732 = vmul.f32 %v726, %v730
    %v733 = vlaneseq
    %v734 = vshrl.u32 %v733, 7
    %v735 = vsub.s32 5, %v734
    %v736 = vrot.slane %v28, %v735
    %v737 = vadd.f32 %v731, %v736
    %v738 = vadd.f32 %v732, %v736
    %v739 = vlaneseq
    %v740 = vshrl.u32 %v739, 7
    %v741 = vsub.s32 6, %v740
    %v742 = vrot.slane %v28, %v741
    %v744 = vsel %vm31, %v737, 0
    %v747 = vsel %vm31, %v738, 0
    %749 = vmatprep.subr.mxu0 0.0
    %750 = vmatpush1.msra.mxu0 %v21
    %751 = vmatprep.subr.mxu0 0.0
    %752 = vmatpush1.msra.mxu0 %v23
    %753 = vmatprep.subr.mxu0 0.0
    %754 = vmatpush1.msra.mxu0 %v25
    %755 = vmatprep.subr.mxu0 0.0
    %756 = vmatpush1.msra.mxu0 %v27
    %757 = vmatprep.subr.mxu0 0.0
    %758 = vmatpush1.msra.mxu0 0.0
    %759 = vmatprep.subr.mxu0 0.0
    %760 = vmatpush1.msra.mxu0 0.0
    %761 = vmatprep.subr.mxu0 0.0
    %762 = vmatpush1.msra.mxu0 0.0
    %763 = vmatprep.subr.mxu0 0.0
    %764 = vmatpush1.msra.mxu0 0.0
    %765 = vmatprep.subr.mxu0 0.0
    %766 = vmatpush1.msra.mxu0 0.0
    %767 = vmatprep.subr.mxu0 0.0
    %768 = vmatpush1.msra.mxu0 0.0
    %769 = vmatprep.subr.mxu0 0.0
    %770 = vmatpush1.msra.mxu0 0.0
    %771 = vmatprep.subr.mxu0 0.0
    %772 = vmatpush1.msra.mxu0 0.0
    %773 = vmatprep.subr.mxu0 0.0
    %774 = vmatpush1.msra.mxu0 0.0
    %775 = vmatprep.subr.mxu0 0.0
    %776 = vmatpush1.msra.mxu0 0.0
    %777 = vmatprep.subr.mxu0 0.0
    %778 = vmatpush1.msra.mxu0 0.0
    %779 = vmatprep.subr.mxu0 0.0
    %780 = vmatpush1.msra.mxu0 0.0
    %781 = vmatprep.subr.mxu0 0.0
    %782 = vmatpush1.msra.mxu0 0.0
    %783 = vmatprep.subr.mxu0 0.0
    %784 = vmatpush1.msra.mxu0 0.0
    %785 = vmatprep.subr.mxu0 0.0
    %786 = vmatpush1.msra.mxu0 0.0
    %787 = vmatprep.subr.mxu0 0.0
    %788 = vmatpush1.msra.mxu0 0.0
    %789 = vmatprep.subr.mxu0 0.0
    %790 = vmatpush1.msra.mxu0 0.0
    %791 = vmatprep.subr.mxu0 0.0
    %792 = vmatpush1.msra.mxu0 0.0
    %793 = vmatprep.subr.mxu0 0.0
    %794 = vmatpush1.msra.mxu0 0.0
    %795 = vmatprep.subr.mxu0 0.0
    %796 = vmatpush1.msra.mxu0 0.0
    %797 = vmatprep.subr.mxu0 0.0
    %798 = vmatpush1.msra.mxu0 0.0
    %799 = vmatprep.subr.mxu0 0.0
    %800 = vmatpush1.msra.mxu0 0.0
    %801 = vmatprep.subr.mxu0 0.0
    %802 = vmatpush1.msra.mxu0 0.0
    %803 = vmatprep.subr.mxu0 0.0
    %804 = vmatpush1.msra.mxu0 0.0
    %805 = vmatprep.subr.mxu0 0.0
    %806 = vmatpush1.msra.mxu0 0.0
    %807 = vmatprep.subr.mxu0 0.0
    %808 = vmatpush1.msra.mxu0 0.0
    %809 = vmatprep.subr.mxu0 0.0
    %810 = vmatpush1.msra.mxu0 0.0
    %811 = vmatprep.subr.mxu0 0.0
    %812 = vmatpush1.msra.mxu0 0.0
    %813 = vmatprep.mubr.f32.mxu0 0.0
    %814 = vmatmul.mubr.f32.gmra.mrb[0].mxu0 %v744
    %v815 = vpop.f32.mrb[0].mxu0
    %v816 = vadd.f32 %v742, %v815
    %v817 = vpop.f32.mrb[0].mxu0
    %818 = vmatprep.mubr.f32.mxu0 0.0
    %819 = vmatmul.mubr.f32.gmra.mrb[0].mxu0 %v747
    %v820 = vpop.f32.mrb[0].mxu0
    %v821 = vadd.f32 %v742, %v820
    %v822 = vpop.f32.mrb[0].mxu0
    %823 = vdwg.mxu0
    %v824 = vmax.f32 %v816, 0.0
    %v825 = vmax.f32 %v821, 0.0
    %v826 = vld [vmem:[%s2] sm:$0xff]
    %v827 = vld [vmem:[%s2 + $0x8] sm:$0xff]
    %v828 = vld [vmem:[%s2 + $0x10] sm:$0xff]
    %v829 = vld [vmem:[%s2 + $0x18] sm:$0xff]
    %v830 = vld [vmem:[%s2 + $0x20] sm:$0xff]
    %v831 = vld [vmem:[%s2 + $0x28] sm:$0xff]
    %v832 = vld [vmem:[%s2 + $0x30] sm:$0xff]
    %v833 = vld [vmem:[%s2 + $0x38] sm:$0xff]
    %v834 = vlaneseq
    %v835 = vshrl.u32 %v834, 7
    %v836 = vsub.s32 7, %v835
    %v837 = vrot.slane %v28, %v836
    %v839 = vsel %vm393, %v824, 0
    %v842 = vsel %vm393, %v825, 0
    %844 = vmatprep.subr.mxu0 0.0
    %845 = vmatpush1.msra.mxu0 %v826
    %846 = vmatprep.subr.mxu0 0.0
    %847 = vmatpush1.msra.mxu0 %v827
    %848 = vmatprep.subr.mxu0 0.0
    %849 = vmatpush1.msra.mxu0 %v828
    %850 = vmatprep.subr.mxu0 0.0
    %851 = vmatpush1.msra.mxu0 %v829
    %852 = vmatprep.subr.mxu0 0.0
    %853 = vmatpush1.msra.mxu0 %v830
    %854 = vmatprep.subr.mxu0 0.0
    %855 = vmatpush1.msra.mxu0 %v831
    %856 = vmatprep.subr.mxu0 0.0
    %857 = vmatpush1.msra.mxu0 %v832
    %858 = vmatprep.subr.mxu0 0.0
    %859 = vmatpush1.msra.mxu0 %v833
    %860 = vmatprep.subr.mxu0 0.0
    %861 = vmatpush1.msra.mxu0 0.0
    %862 = vmatprep.subr.mxu0 0.0
    %863 = vmatpush1.msra.mxu0 0.0
    %864 = vmatprep.subr.mxu0 0.0
    %865 = vmatpush1.msra.mxu0 0.0
    %866 = vmatprep.subr.mxu0 0.0
    %867 = vmatpush1.msra.mxu0 0.0
    %868 = vmatprep.subr.mxu0 0.0
    %869 = vmatpush1.msra.mxu0 0.0
    %870 = vmatprep.subr.mxu0 0.0
    %871 = vmatpush1.msra.mxu0 0.0
    %872 = vmatprep.subr.mxu0 0.0
    %873 = vmatpush1.msra.mxu0 0.0
    %874 = vmatprep.subr.mxu0 0.0
    %875 = vmatpush1.msra.mxu0 0.0
    %876 = vmatprep.subr.mxu0 0.0
    %877 = vmatpush1.msra.mxu0 0.0
    %878 = vmatprep.subr.mxu0 0.0
    %879 = vmatpush1.msra.mxu0 0.0
    %880 = vmatprep.subr.mxu0 0.0
    %881 = vmatpush1.msra.mxu0 0.0
    %882 = vmatprep.subr.mxu0 0.0
    %883 = vmatpush1.msra.mxu0 0.0
    %884 = vmatprep.subr.mxu0 0.0
    %885 = vmatpush1.msra.mxu0 0.0
    %886 = vmatprep.subr.mxu0 0.0
    %887 = vmatpush1.msra.mxu0 0.0
    %888 = vmatprep.subr.mxu0 0.0
    %889 = vmatpush1.msra.mxu0 0.0
    %890 = vmatprep.subr.mxu0 0.0
    %891 = vmatpush1.msra.mxu0 0.0
    %892 = vmatprep.subr.mxu0 0.0
    %893 = vmatpush1.msra.mxu0 0.0
    %894 = vmatprep.subr.mxu0 0.0
    %895 = vmatpush1.msra.mxu0 0.0
    %896 = vmatprep.subr.mxu0 0.0
    %897 = vmatpush1.msra.mxu0 0.0
    %898 = vmatprep.subr.mxu0 0.0
    %899 = vmatpush1.msra.mxu0 0.0
    %900 = vmatprep.subr.mxu0 0.0
    %901 = vmatpush1.msra.mxu0 0.0
    %902 = vmatprep.subr.mxu0 0.0
    %903 = vmatpush1.msra.mxu0 0.0
    %904 = vmatprep.subr.mxu0 0.0
    %905 = vmatpush1.msra.mxu0 0.0
    %906 = vmatprep.subr.mxu0 0.0
    %907 = vmatpush1.msra.mxu0 0.0
    %908 = vmatprep.mubr.f32.mxu0 0.0
    %909 = vmatmul.mubr.f32.gmra.mrb[0].mxu0 %v839
    %v910 = vpop.f32.mrb[0].mxu0
    %v911 = vadd.f32 %v837, %v910
    %v912 = vpop.f32.mrb[0].mxu0
    %913 = vmatprep.mubr.f32.mxu0 0.0
    %914 = vmatmul.mubr.f32.gmra.mrb[0].mxu0 %v842
    %v915 = vpop.f32.mrb[0].mxu0
    %v916 = vadd.f32 %v837, %v915
    %v917 = vpop.f32.mrb[0].mxu0
    %918 = vdwg.mxu0
    %v919 = vadd.f32 %v911, %v699
    %v920 = vadd.f32 %v916, %v700
    %921 = vst.msk [vmem:[#allocation2] sm:$0xff] %vm31, %v919
    %922 = vst.msk [vmem:[#allocation2 + $0x8] sm:$0xff] %vm31, %v920
    // Predicated region
    $region18: #{transformer_encoder_layer.1} parent=1 // pred_check
      _
    $region19: #{transformer_encoder_layer.1} parent=1 // pred_check_branch
      %924 = sbr.rel (0) target = $region21
    $region20: #{transformer_encoder_layer.1} parent=1 // pred_region
      %s926 = ssub.s32 256, 256
      %927 = vsyncadd [#allocation3], %s926
      %s928 = sshll.u32 [#allocation2], 4
      %s929 = int_to_ptr.vmem [resolvable:$true] %s928
      %934 = dma.vmem_to_hbm [thread:$0]  %s929, 256, %s4, [#allocation3], 128, 128, 8
    $region21: #{transformer_encoder_layer.1} parent=1 // pred_fallthru
      _
    // Predicated region
    $region22: #{transformer_encoder_layer.1} parent=1 // pred_check
      _
    $region23: #{transformer_encoder_layer.1} parent=1 // pred_check_branch
      %936 = sbr.rel (0) target = $region25
    $region24: #{transformer_encoder_layer.1} parent=1 // pred_region
      %937 = dma.done [#allocation3], 256
    $region25: #{transformer_encoder_layer.1} parent=1 // pred_fallthru
      _
    %938 = vsyncpa [#allocation3], 1

</llo_original>
